<compile_context>
chip_gen: v7x
topology: tpu7x:2x2x1
jax: 0.10.0
libtpu: 0.0.40
codegen_flags: <defaults>
</compile_context>

<pallas_src>
import functools

import jax
import jax.numpy as jnp
from jax.experimental import pallas as pl
from jax.experimental.pallas import tpu as pltpu


def _round_up(a, m):
    return ((a + m - 1) // m) * m


def _critic_arm_kernel(n_hidden, k0, x_ref, w_ref, b_ref, o_ref):
    # x_ref: (TB, K0) f32      w_ref: (n_layers, P, P) bf16
    # b_ref: (n_layers, 1, P) f32      o_ref: (1, 1, TB) f32
    h = x_ref[...]  # (TB, K0) f32; any padded lanes/rows are zero
    for l in range(n_hidden):
        # Static Ref slices -> only the needed weight rows are ever loaded.
        w = w_ref[l, 0:k0, :] if l == 0 else w_ref[l]        # bf16
        z = jnp.dot(h.astype(w.dtype), w,
                    preferred_element_type=jnp.float32)      # MXU, f32 accum
        h = jnp.tanh(z + b_ref[l])                           # f32 VPU/EUP

    # Final Linear(., 1) + Tanh.  Contract the feature axis of w_last (1,P)
    # with the feature axis of h (TB,P) -> (1,TB): naturally lane-dense output
    # (same dot_general pattern as q @ k.T in attention).
    w_last = w_ref[n_hidden, 0:1, :]                         # (1, P) bf16
    b_last = b_ref[n_hidden, 0:1, 0:1]                       # (1, 1) f32
    y = jax.lax.dot_general(
        w_last, h.astype(w_last.dtype),
        dimension_numbers=(((1,), (1,)), ((), ())),
        preferred_element_type=jnp.float32)                  # (1, TB) f32
    o_ref[0] = jnp.tanh(y + b_last).astype(o_ref.dtype)


def pack_critic_arm_params(weights, biases, *, weight_dtype=jnp.bfloat16):
    """Pack per-layer (in,out) weights / (1,out) biases into two padded buffers.

    Returns (w_packed, b_packed) with shapes (n_layers, P, P) [weight_dtype]
    and (n_layers, 1, P) [f32]; the final layer's (A_last, 1) weight is stored
    as a row at w_packed[n_layers-1, 0, :A_last] and its bias at
    b_packed[-1, 0, 0].  Done once per parameter set.
    """
    assert len(weights) == len(biases) and len(weights) >= 2
    n_layers = len(weights)
    n_hidden = n_layers - 1
    P = _round_up(max(max(w.shape) for w in weights), 128)

    w_packed = jnp.zeros((n_layers, P, P), weight_dtype)
    b_packed = jnp.zeros((n_layers, 1, P), jnp.float32)
    for l in range(n_hidden):
        in_d, out_d = weights[l].shape
        w_packed = w_packed.at[l, :in_d, :out_d].set(
            weights[l].astype(weight_dtype))
        b_packed = b_packed.at[l, 0, :out_d].set(
            biases[l][0].astype(jnp.float32))
    in_last = weights[-1].shape[0]
    w_packed = w_packed.at[n_hidden, 0, :in_last].set(
        weights[-1][:, 0].astype(weight_dtype))
    b_packed = b_packed.at[n_hidden, 0, 0].set(
        biases[-1][0, 0].astype(jnp.float32))
    return w_packed, b_packed


def critic_arm_forward(x, w_packed, b_packed, *, batch_tile=1024):
    """Fused MLP forward.

    x:        (B, input_dim) float32
    w_packed: (n_layers, P, P)  (from pack_critic_arm_params)
    b_packed: (n_layers, 1, P) float32
    returns:  (B, 1) float32
    """
    n_layers, P, _ = w_packed.shape
    n_hidden = n_layers - 1
    B, D0 = x.shape
    assert D0 <= P

    # Keep x lane-dense: pad the feature dim only up to a multiple of 16 so the
    # layer-0 bf16 weight Ref-slice stays sublane-aligned (no-op for D0=32).
    K0 = min(_round_up(D0, 16), P)

    # Batch tile: as large as possible (amortize ~0.35us/step overhead), but
    # ~ceil(B/2) so batches big enough to split keep >=2 parallel grid steps
    # for the two v7x TensorCores.  Multiple of 8 sublanes, capped at
    # `batch_tile`.  VMEM footprint stays well under 1 MiB per buffer.
    TB = max(8, min(_round_up(batch_tile, 8), _round_up(-(-B // 2), 8)))
    B_pad = _round_up(B, TB)
    num_tiles = B_pad // TB

    x_p = jnp.pad(x.astype(jnp.float32), ((0, B_pad - B), (0, K0 - D0)))

    kernel = functools.partial(_critic_arm_kernel, n_hidden, K0)

    flops = 2 * B_pad * (K0 * P + (n_hidden - 1) * P * P + P)
    transcendentals = B_pad * (n_hidden * P + 1)
    bytes_accessed = (x_p.size * 4 + w_packed.size * w_packed.dtype.itemsize
                      + b_packed.size * 4 + B_pad * 4)

    out = pl.pallas_call(
        kernel,
        out_shape=jax.ShapeDtypeStruct((num_tiles, 1, TB), jnp.float32),
        grid=(num_tiles,),
        in_specs=[
            # activation tile: pipelined over the batch grid axis, lane-dense
            pl.BlockSpec((TB, K0), lambda i: (i, 0)),
            # packed weights / biases: constant block index -> VMEM resident
            pl.BlockSpec((n_layers, P, P), lambda i: (0, 0, 0)),
            pl.BlockSpec((n_layers, 1, P), lambda i: (0, 0, 0)),
        ],
        out_specs=pl.BlockSpec((1, 1, TB), lambda i: (i, 0, 0)),
        compiler_params=pltpu.CompilerParams(
            dimension_semantics=("parallel",),
        ),
        cost_estimate=pl.CostEstimate(
            flops=int(flops),
            transcendentals=int(transcendentals),
            bytes_accessed=int(bytes_accessed)),
    )(x_p, w_packed, b_packed)
    return out.reshape(B_pad, 1)[:B]


def init_critic_arm_params(key, shared_output_dim, arm_list):
    """Deterministic init mimicking nn.Linear default (U(-1/sqrt(fan_in), +))."""
    dims = [shared_output_dim] + list(arm_list) + [1]
    weights, biases = [], []
    for l in range(len(dims) - 1):
        fan_in, fan_out = dims[l], dims[l + 1]
        key, kw, kb = jax.random.split(key, 3)
        bound = 1.0 / jnp.sqrt(jnp.float32(fan_in))
        # stored transposed relative to PyTorch: (in, out)
        w = jax.random.uniform(kw, (fan_in, fan_out), jnp.float32, -bound, bound)
        b = jax.random.uniform(kb, (1, fan_out), jnp.float32, -bound, bound)
        weights.append(w)
        biases.append(b)
    return weights, biases


def critic_arm_reference(x, weights, biases):
    """Plain-JAX f32 reference of the same forward pass."""
    h = x
    for w, b in zip(weights, biases):
        h = jnp.tanh(h @ w + b)
    return h


if __name__ == "__main__":
    key = jax.random.PRNGKey(0)

    # Shapes consistent with the module: batch=8, shared_output_dim=32,
    # arm_list=[32, 16] -> Linear(32,32)+Tanh, Linear(32,16)+Tanh, Linear(16,1)+Tanh
    batch = 8
    shared_output_dim = 32
    arm_list = [32, 16]

    key, kx, kp = jax.random.split(key, 3)
    x = jax.random.normal(kx, (batch, shared_output_dim), jnp.float32)
    weights, biases = init_critic_arm_params(kp, shared_output_dim, arm_list)
    w_packed, b_packed = pack_critic_arm_params(weights, biases)

    out = jax.block_until_ready(critic_arm_forward(x, w_packed, b_packed))
    ref = critic_arm_reference(x, weights, biases)
    assert out.shape == (batch, 1), out.shape
    # bf16 weights -> compare against the f32 reference with a loose tolerance
    assert jnp.allclose(out, ref, atol=2e-2, rtol=2e-2), "mismatch vs reference (B=8)"

    # Larger batch: exercises the multi-tile (>=2 parallel grid steps) path
    # and the row-padding of the last partial tile.
    key, kx2 = jax.random.split(key)
    x2 = jax.random.normal(kx2, (300, shared_output_dim), jnp.float32)
    out2 = jax.block_until_ready(critic_arm_forward(x2, w_packed, b_packed))
    ref2 = critic_arm_reference(x2, weights, biases)
    assert out2.shape == (300, 1), out2.shape
    assert jnp.allclose(out2, ref2, atol=2e-2, rtol=2e-2), "mismatch vs reference (B=300)"

    print("KERNEL_OK")
</pallas_src>

<mosaic_0001>
module attributes {stable_mosaic.version = 11 : i64} {
  func.func @_critic_arm_kernel(%arg0: i32, %arg1: memref<8x32xf32, #tpu.memory_space<vmem>>, %arg2: memref<3x128x128xbf16, #tpu.memory_space<vmem>>, %arg3: memref<3x1x128xf32, #tpu.memory_space<vmem>>, %arg4: memref<1x1x8xf32, #tpu.memory_space<vmem>>) attributes {dimension_semantics = [#tpu.dimension_semantics<parallel>], iteration_bounds = array<i64: 1>, scalar_prefetch = 0 : i64, scratch_operands = 0 : i64, tpu.core_type = #tpu.core_type<tc>, window_params = [{transform_indices = @transform_0, window_bounds = array<i64: 8, 32>}, {pipeline_mode = #tpu.pipeline_mode<synchronous>, transform_indices = @transform_1, window_bounds = array<i64: 3, 128, 128>}, {pipeline_mode = #tpu.pipeline_mode<synchronous>, transform_indices = @transform_2, window_bounds = array<i64: 3, 1, 128>}, {transform_indices = @transform_3, window_bounds = array<i64: 1, 1, 8>}]} {
    %c0 = arith.constant 0 : index
    %c0_0 = arith.constant 0 : index
    %0 = vector.load %arg1[%c0, %c0_0] : memref<8x32xf32, #tpu.memory_space<vmem>>, vector<8x32xf32>
    %c0_1 = arith.constant 0 : index
    %c0_2 = arith.constant 0 : index
    %c0_3 = arith.constant 0 : index
    %1 = vector.load %arg2[%c0_1, %c0_2, %c0_3] : memref<3x128x128xbf16, #tpu.memory_space<vmem>>, vector<1x32x128xbf16>
    %2 = vector.shape_cast %1 : vector<1x32x128xbf16> to vector<32x128xbf16>
    %3 = arith.truncf %0 : vector<8x32xf32> to vector<8x32xbf16>
    %cst = arith.constant dense<0.000000e+00> : vector<8x128xf32>
    %4 = tpu.matmul %3, %2, %cst {dimension_numbers = #tpu.dot_dimension_numbers<[1], [0], [0], [1], [0, 0, 1, 1], [], []>} : vector<8x32xbf16>, vector<32x128xbf16>, vector<8x128xf32> -> vector<8x128xf32>
    %c0_4 = arith.constant 0 : index
    %c0_5 = arith.constant 0 : index
    %c0_6 = arith.constant 0 : index
    %5 = vector.load %arg3[%c0_4, %c0_5, %c0_6] : memref<3x1x128xf32, #tpu.memory_space<vmem>>, vector<1x1x128xf32>
    %6 = vector.shape_cast %5 : vector<1x1x128xf32> to vector<1x128xf32>
    %7 = vector.broadcast %6 : vector<1x128xf32> to vector<8x128xf32>
    %8 = arith.addf %4, %7 : vector<8x128xf32>
    %9 = math.tanh %8 : vector<8x128xf32>
    %c1 = arith.constant 1 : index
    %c0_7 = arith.constant 0 : index
    %c0_8 = arith.constant 0 : index
    %10 = vector.load %arg2[%c1, %c0_7, %c0_8] : memref<3x128x128xbf16, #tpu.memory_space<vmem>>, vector<1x128x128xbf16>
    %11 = vector.shape_cast %10 : vector<1x128x128xbf16> to vector<128x128xbf16>
    %12 = arith.truncf %9 : vector<8x128xf32> to vector<8x128xbf16>
    %cst_9 = arith.constant dense<0.000000e+00> : vector<8x128xf32>
    %13 = tpu.matmul %12, %11, %cst_9 {dimension_numbers = #tpu.dot_dimension_numbers<[1], [0], [0], [1], [0, 0, 1, 1], [], []>} : vector<8x128xbf16>, vector<128x128xbf16>, vector<8x128xf32> -> vector<8x128xf32>
    %c1_10 = arith.constant 1 : index
    %c0_11 = arith.constant 0 : index
    %c0_12 = arith.constant 0 : index
    %14 = vector.load %arg3[%c1_10, %c0_11, %c0_12] : memref<3x1x128xf32, #tpu.memory_space<vmem>>, vector<1x1x128xf32>
    %15 = vector.shape_cast %14 : vector<1x1x128xf32> to vector<1x128xf32>
    %16 = vector.broadcast %15 : vector<1x128xf32> to vector<8x128xf32>
    %17 = arith.addf %13, %16 : vector<8x128xf32>
    %18 = math.tanh %17 : vector<8x128xf32>
    %c2 = arith.constant 2 : index
    %c0_13 = arith.constant 0 : index
    %c0_14 = arith.constant 0 : index
    %19 = vector.load %arg2[%c2, %c0_13, %c0_14] : memref<3x128x128xbf16, #tpu.memory_space<vmem>>, vector<1x1x128xbf16>
    %20 = vector.shape_cast %19 : vector<1x1x128xbf16> to vector<1x128xbf16>
    %c2_15 = arith.constant 2 : index
    %c0_16 = arith.constant 0 : index
    %c0_17 = arith.constant 0 : index
    %21 = vector.load %arg3[%c2_15, %c0_16, %c0_17] : memref<3x1x128xf32, #tpu.memory_space<vmem>>, vector<1x1x1xf32>
    %22 = vector.shape_cast %21 : vector<1x1x1xf32> to vector<1x1xf32>
    %23 = arith.truncf %18 : vector<8x128xf32> to vector<8x128xbf16>
    %cst_18 = arith.constant dense<0.000000e+00> : vector<1x8xf32>
    %24 = tpu.matmul %20, %23, %cst_18 {dimension_numbers = #tpu.dot_dimension_numbers<[1], [1], [0], [0], [0, 0, 1, 0], [], []>} : vector<1x128xbf16>, vector<8x128xbf16>, vector<1x8xf32> -> vector<1x8xf32>
    %25 = vector.broadcast %22 : vector<1x1xf32> to vector<1x8xf32>
    %26 = arith.addf %24, %25 : vector<1x8xf32>
    %27 = math.tanh %26 : vector<1x8xf32>
    %c0_19 = arith.constant 0 : index
    %c0_20 = arith.constant 0 : index
    %c0_21 = arith.constant 0 : index
    %28 = vector.load %arg4[%c0_19, %c0_20, %c0_21] : memref<1x1x8xf32, #tpu.memory_space<vmem>>, vector<1x1x8xf32>
    %29 = vector.shape_cast %28 : vector<1x1x8xf32> to vector<1x8xf32>
    %30 = vector.shape_cast %27 : vector<1x8xf32> to vector<1x1x8xf32>
    tpu.vector_store %arg4[%c0_19, %c0_20, %c0_21], %30 {strides = array<i32>} : memref<1x1x8xf32, #tpu.memory_space<vmem>>, vector<1x1x8xf32>,
    return
  }
  func.func @transform_0(%arg0: i32) -> (i32, i32) {
    %c0_i32 = arith.constant 0 : i32
    %c0_i32_0 = arith.constant 0 : i32
    return %arg0, %c0_i32 : i32, i32
  }
  func.func @transform_1(%arg0: i32) -> (i32, i32, i32) {
    %c0_i32 = arith.constant 0 : i32
    %c0_i32_0 = arith.constant 0 : i32
    %c0_i32_1 = arith.constant 0 : i32
    %c0_i32_2 = arith.constant 0 : i32
    return %c0_i32, %c0_i32_0, %c0_i32_1 : i32, i32, i32
  }
  func.func @transform_2(%arg0: i32) -> (i32, i32, i32) {
    %c0_i32 = arith.constant 0 : i32
    %c0_i32_0 = arith.constant 0 : i32
    %c0_i32_1 = arith.constant 0 : i32
    %c0_i32_2 = arith.constant 0 : i32
    return %c0_i32, %c0_i32_0, %c0_i32_1 : i32, i32, i32
  }
  func.func @transform_3(%arg0: i32) -> (i32, i32, i32) {
    %c0_i32 = arith.constant 0 : i32
    %c0_i32_0 = arith.constant 0 : i32
    %c0_i32_1 = arith.constant 0 : i32
    return %arg0, %c0_i32, %c0_i32_0 : i32, i32, i32
  }
}

</mosaic_0001>

<llo_original>
// kernel: tpu_custom_call.1
$region0: #{tpu_custom_call.1}
  #allocation0 [shape = 'u32[]', space=smem, size = 0x4, offset = 0x4, fixed_abs, tag = 'smem constant byte address 0x4 - core index']
  #allocation1 [shape = 'u32[144,128]{1,0:T(1,128)}', space=vmem, size = 0x12000, scoped, tag = 'internal scratch']
  %s0 = inlined_call_operand.hbm [shape: f32[8,32], index: 0, kind: input, shape index: {}]
  %s1 = inlined_call_operand.hbm [shape: bf16[3,128,128], index: 1, kind: input, shape index: {}]
  %s2 = inlined_call_operand.vmem [shape: f32[3,1,128], index: 2, kind: input, shape index: {}]
  %s3 = inlined_call_operand.hbm [shape: f32[1,1,8], index: 3, kind: output, shape index: {}]
  %s4 = sld [smem:[#allocation0]]
  $region30: #{tpu_custom_call.1} parent=0
    _
  %s6 = ssub.s32 1, %s4
  %s7 = scalar_select 0, %s6, %s4
  $region1: #{tpu_custom_call.1} parent=0
    #allocation2 [shape = 'u8[4096]{0}', space=vmem, size = 0x1000, scoped, tag = 'input window, operand 0, single buffered']
    #allocation3 [shape = 's32[1]{0}', space=sflag, size = 0x4, scoped, tag = 'scoped memory for tpu_custom_call.1']
    #allocation4 [shape = 's32[1]{0}', space=sflag, size = 0x4, scoped, tag = 'scoped memory for tpu_custom_call.1']
    #allocation5 [shape = 'u8[98304]{0}', space=vmem, size = 0x18000, scoped, tag = 'input window, operand 1, single buffered']
    #allocation6 [shape = 's32[1]{0}', space=sflag, size = 0x4, scoped, tag = 'scoped memory for tpu_custom_call.1']
    #allocation7 [shape = 'u8[512]{0}', space=vmem, size = 0x400, scoped, tag = 'output window, operand 0, single buffered']
    %8 = vsyncpa [#allocation3], 0
    %9 = vsyncpa [#allocation6], 0
    %10 = vsyncpa [#allocation4], 0
    // Predicated region
    $region2: #{tpu_custom_call.1} parent=1 // pred_check
      _
    $region3: #{tpu_custom_call.1} parent=1 // pred_check_branch
      %12 = sbr.rel (0) target = $region5
    $region4: #{tpu_custom_call.1} parent=1 // pred_region
      %s14 = ssub.s32 128, 128
      %15 = vsyncadd [#allocation3], %s14
      %s17 = sshll.u32 [#allocation2], 4
      %s18 = int_to_ptr.vmem [resolvable:$true] %s17
      %20 = dma.hbm_to_vmem [thread:$0]  %s0, 128, %s18, [#allocation3]
    $region5: #{tpu_custom_call.1} parent=1 // pred_fallthru
      _
    // Predicated region
    $region6: #{tpu_custom_call.1} parent=1 // pred_check
      _
    $region7: #{tpu_custom_call.1} parent=1 // pred_check_branch
      %22 = sbr.rel (0) target = $region9
    $region8: #{tpu_custom_call.1} parent=1 // pred_region
      %s24 = ssub.s32 3072, 3072
      %25 = vsyncadd [#allocation6], %s24
      %s26 = sshll.u32 [#allocation5], 4
      %s27 = int_to_ptr.vmem [resolvable:$true] %s26
      %32 = dma.hbm_to_vmem [thread:$0]  %s1, 3072, %s27, [#allocation6], 64, 64, 4
    $region9: #{tpu_custom_call.1} parent=1 // pred_fallthru
      _
    // Predicated region
    $region10: #{tpu_custom_call.1} parent=1 // pred_check
      _
    $region11: #{tpu_custom_call.1} parent=1 // pred_check_branch
      %34 = sbr.rel (0) target = $region13
    $region12: #{tpu_custom_call.1} parent=1 // pred_region
      _
    $region13: #{tpu_custom_call.1} parent=1 // pred_fallthru
      _
    // Predicated region
    $region14: #{tpu_custom_call.1} parent=1 // pred_check
      _
    $region15: #{tpu_custom_call.1} parent=1 // pred_check_branch
      %36 = sbr.rel (0) target = $region17
    $region16: #{tpu_custom_call.1} parent=1 // pred_region
      %37 = dma.done [#allocation3], 128
    $region17: #{tpu_custom_call.1} parent=1 // pred_fallthru
      _
    // Predicated region
    $region18: #{tpu_custom_call.1} parent=1 // pred_check
      _
    $region19: #{tpu_custom_call.1} parent=1 // pred_check_branch
      %39 = sbr.rel (0) target = $region21
    $region20: #{tpu_custom_call.1} parent=1 // pred_region
      %40 = dma.done [#allocation6], 3072
    $region21: #{tpu_custom_call.1} parent=1 // pred_fallthru
      _
    %v42 = vld [vmem:[#allocation2] sm:$0xff]
    %v43 = vld [vmem:[#allocation5] sm:$0xf]
    %v44 = vld [vmem:[#allocation5 + $0x4] sm:$0xf]
    %v45 = vld [vmem:[#allocation5 + $0x8] sm:$0xf]
    %v46 = vld [vmem:[#allocation5 + $0xc] sm:$0xf]
    %v47 = vpack.c.bf16 %v42, %v42
    %v48 = vld [vmem:[%s2] sm:$0x1]
    %v50 = vlaneseq
    %v51 = vshrl.u32 %v50, 7
    %v52 = vsub.s32 0, %v51
    %v53 = vrot.slane %v48, %v52
    %v59 = vunpack.c.l.b16 %v43
    %v60 = vunpack.c.l.b16 %v44
    %v61 = vunpack.c.l.b16 %v45
    %v62 = vunpack.c.l.b16 %v46
    %v63 = vpack.c.b16 %v60, %v59
    %v64 = vpack.c.b16 %v62, %v61
    %vm67 = vcmask 261120
    %v69 = vsel %vm67, %v47, 0
    %71 = vmatprep.subr.bf16.mxu0 0
    %72 = vmatpush1.bf16.msra.mxu0 %v63
    %73 = vmatprep.subr.bf16.mxu0 0
    %74 = vmatpush1.bf16.msra.mxu0 %v64
    %75 = vmatprep.subr.bf16.mxu0 0
    %76 = vmatpush1.bf16.msra.mxu0 0
    %77 = vmatprep.subr.bf16.mxu0 0
    %78 = vmatpush1.bf16.msra.mxu0 0
    %79 = vmatprep.subr.bf16.mxu0 0
    %80 = vmatpush1.bf16.msra.mxu0 0
    %81 = vmatprep.subr.bf16.mxu0 0
    %82 = vmatpush1.bf16.msra.mxu0 0
    %83 = vmatprep.subr.bf16.mxu0 0
    %84 = vmatpush1.bf16.msra.mxu0 0
    %85 = vmatprep.subr.bf16.mxu0 0
    %86 = vmatpush1.bf16.msra.mxu0 0
    %87 = vmatprep.subr.bf16.mxu0 0
    %88 = vmatpush1.bf16.msra.mxu0 0
    %89 = vmatprep.subr.bf16.mxu0 0
    %90 = vmatpush1.bf16.msra.mxu0 0
    %91 = vmatprep.subr.bf16.mxu0 0
    %92 = vmatpush1.bf16.msra.mxu0 0
    %93 = vmatprep.subr.bf16.mxu0 0
    %94 = vmatpush1.bf16.msra.mxu0 0
    %95 = vmatprep.subr.bf16.mxu0 0
    %96 = vmatpush1.bf16.msra.mxu0 0
    %97 = vmatprep.subr.bf16.mxu0 0
    %98 = vmatpush1.bf16.msra.mxu0 0
    %99 = vmatprep.subr.bf16.mxu0 0
    %100 = vmatpush1.bf16.msra.mxu0 0
    %101 = vmatprep.subr.bf16.mxu0 0
    %102 = vmatpush1.bf16.msra.mxu0 0
    %103 = vmatprep.mubr.bf16.mxu0 0
    %104 = vmatmul.mubr.bf16.gmra.mrb[0].mxu0 %v69
    %v105 = vpop.f32.mrb[0].mxu0
    %v106 = vadd.f32 %v53, %v105
    %v107 = vpop.f32.mrb[0].mxu0
    %v108 = vpop.f32.mrb[0].mxu0
    %v109 = vpop.f32.mrb[0].mxu0
    %110 = vdwg.mxu0
    %v111 = vtanh.pop %v106
    %s112 = scalar_lea.vmem [#allocation5], 64
    %v113 = vld [vmem:[%s112] sm:$0xf]
    %v114 = vld [vmem:[%s112 + $0x4] sm:$0xf]
    %v115 = vld [vmem:[%s112 + $0x8] sm:$0xf]
    %v116 = vld [vmem:[%s112 + $0xc] sm:$0xf]
    %v117 = vld [vmem:[%s112 + $0x10] sm:$0xf]
    %v118 = vld [vmem:[%s112 + $0x14] sm:$0xf]
    %v119 = vld [vmem:[%s112 + $0x18] sm:$0xf]
    %v120 = vld [vmem:[%s112 + $0x1c] sm:$0xf]
    %v121 = vld [vmem:[%s112 + $0x20] sm:$0xf]
    %v122 = vld [vmem:[%s112 + $0x24] sm:$0xf]
    %v123 = vld [vmem:[%s112 + $0x28] sm:$0xf]
    %v124 = vld [vmem:[%s112 + $0x2c] sm:$0xf]
    %v125 = vld [vmem:[%s112 + $0x30] sm:$0xf]
    %v126 = vld [vmem:[%s112 + $0x34] sm:$0xf]
    %v127 = vld [vmem:[%s112 + $0x38] sm:$0xf]
    %v128 = vld [vmem:[%s112 + $0x3c] sm:$0xf]
    %v129 = vpack.c.bf16 %v111, %v111
    %s130 = scalar_lea.vmem %s2, 1
    %v131 = vld [vmem:[%s130] sm:$0x1]
    %v133 = vlaneseq
    %v134 = vshrl.u32 %v133, 7
    %v135 = vsub.s32 0, %v134
    %v136 = vrot.slane %v131, %v135
    %v154 = vunpack.c.l.b16 %v113
    %v155 = vunpack.c.l.b16 %v114
    %v156 = vunpack.c.l.b16 %v115
    %v157 = vunpack.c.l.b16 %v116
    %v158 = vunpack.c.l.b16 %v117
    %v159 = vunpack.c.l.b16 %v118
    %v160 = vunpack.c.l.b16 %v119
    %v161 = vunpack.c.l.b16 %v120
    %v162 = vunpack.c.l.b16 %v121
    %v163 = vunpack.c.l.b16 %v122
    %v164 = vunpack.c.l.b16 %v123
    %v165 = vunpack.c.l.b16 %v124
    %v166 = vunpack.c.l.b16 %v125
    %v167 = vunpack.c.l.b16 %v126
    %v168 = vunpack.c.l.b16 %v127
    %v169 = vunpack.c.l.b16 %v128
    %v170 = vpack.c.b16 %v155, %v154
    %v171 = vpack.c.b16 %v157, %v156
    %v172 = vpack.c.b16 %v159, %v158
    %v173 = vpack.c.b16 %v161, %v160
    %v174 = vpack.c.b16 %v163, %v162
    %v175 = vpack.c.b16 %v165, %v164
    %v176 = vpack.c.b16 %v167, %v166
    %v177 = vpack.c.b16 %v169, %v168
    %186 = vmatprep.subr.bf16.mxu0 0
    %187 = vmatpush1.bf16.msra.mxu0 %v170
    %188 = vmatprep.subr.bf16.mxu0 0
    %189 = vmatpush1.bf16.msra.mxu0 %v171
    %190 = vmatprep.subr.bf16.mxu0 0
    %191 = vmatpush1.bf16.msra.mxu0 %v172
    %192 = vmatprep.subr.bf16.mxu0 0
    %193 = vmatpush1.bf16.msra.mxu0 %v173
    %194 = vmatprep.subr.bf16.mxu0 0
    %195 = vmatpush1.bf16.msra.mxu0 %v174
    %196 = vmatprep.subr.bf16.mxu0 0
    %197 = vmatpush1.bf16.msra.mxu0 %v175
    %198 = vmatprep.subr.bf16.mxu0 0
    %199 = vmatpush1.bf16.msra.mxu0 %v176
    %200 = vmatprep.subr.bf16.mxu0 0
    %201 = vmatpush1.bf16.msra.mxu0 %v177
    %202 = vmatprep.subr.bf16.mxu0 0
    %203 = vmatpush1.bf16.msra.mxu0 0
    %204 = vmatprep.subr.bf16.mxu0 0
    %205 = vmatpush1.bf16.msra.mxu0 0
    %206 = vmatprep.subr.bf16.mxu0 0
    %207 = vmatpush1.bf16.msra.mxu0 0
    %208 = vmatprep.subr.bf16.mxu0 0
    %209 = vmatpush1.bf16.msra.mxu0 0
    %210 = vmatprep.subr.bf16.mxu0 0
    %211 = vmatpush1.bf16.msra.mxu0 0
    %212 = vmatprep.subr.bf16.mxu0 0
    %213 = vmatpush1.bf16.msra.mxu0 0
    %214 = vmatprep.subr.bf16.mxu0 0
    %215 = vmatpush1.bf16.msra.mxu0 0
    %216 = vmatprep.subr.bf16.mxu0 0
    %217 = vmatpush1.bf16.msra.mxu0 0
    %218 = vmatprep.mubr.bf16.mxu0 0
    %219 = vmatmul.mubr.bf16.gmra.mrb[0].mxu0 %v129
    %v220 = vpop.f32.mrb[0].mxu0
    %v221 = vadd.f32 %v136, %v220
    %v222 = vpop.f32.mrb[0].mxu0
    %v223 = vpop.f32.mrb[0].mxu0
    %v224 = vpop.f32.mrb[0].mxu0
    %225 = vdwg.mxu0
    %v226 = vtanh.pop %v221
    %s227 = scalar_lea.vmem [#allocation5], 128
    %v228 = vld [vmem:[%s227] sm:$0x1]
    %s229 = scalar_lea.vmem %s2, 2
    %v230 = vld [vmem:[%s229] sm:$0x1]
    %v231 = vpack.c.bf16 %v226, %v226
    %233 = vset.pattern.permute.xlu0 0
    %234 = vperm.xlu0 %233, %v230
    %v235 = vpop.permute.xlu0 %234
    %v237 = vlaneseq
    %v238 = vshrl.u32 %v237, 7
    %v239 = vsub.s32 0, %v238
    %v240 = vrot.slane %v235, %v239
    %241 = vmatprep.subr.bf16.mxu0 0
    %242 = vmatpush1.bf16.xpose.msra.mxu0 %v231
    %243 = vmatprep.subr.bf16.mxu0 0
    %244 = vmatpush1.bf16.xpose.msra.mxu0 0
    %245 = vmatprep.subr.bf16.mxu0 0
    %246 = vmatpush1.bf16.xpose.msra.mxu0 0
    %247 = vmatprep.subr.bf16.mxu0 0
    %248 = vmatpush1.bf16.xpose.msra.mxu0 0
    %249 = vmatprep.subr.bf16.mxu0 0
    %250 = vmatpush1.bf16.xpose.msra.mxu0 0
    %251 = vmatprep.subr.bf16.mxu0 0
    %252 = vmatpush1.bf16.xpose.msra.mxu0 0
    %253 = vmatprep.subr.bf16.mxu0 0
    %254 = vmatpush1.bf16.xpose.msra.mxu0 0
    %255 = vmatprep.subr.bf16.mxu0 0
    %256 = vmatpush1.bf16.xpose.msra.mxu0 0
    %257 = vmatprep.subr.bf16.mxu0 0
    %258 = vmatpush1.bf16.xpose.msra.mxu0 0
    %259 = vmatprep.subr.bf16.mxu0 0
    %260 = vmatpush1.bf16.xpose.msra.mxu0 0
    %261 = vmatprep.subr.bf16.mxu0 0
    %262 = vmatpush1.bf16.xpose.msra.mxu0 0
    %263 = vmatprep.subr.bf16.mxu0 0
    %264 = vmatpush1.bf16.xpose.msra.mxu0 0
    %265 = vmatprep.subr.bf16.mxu0 0
    %266 = vmatpush1.bf16.xpose.msra.mxu0 0
    %267 = vmatprep.subr.bf16.mxu0 0
    %268 = vmatpush1.bf16.xpose.msra.mxu0 0
    %269 = vmatprep.subr.bf16.mxu0 0
    %270 = vmatpush1.bf16.xpose.msra.mxu0 0
    %271 = vmatprep.subr.bf16.mxu0 0
    %272 = vmatpush1.bf16.xpose.msra.mxu0 0
    %273 = vmatprep.mubr.bf16.mxu0 0
    %274 = vmatmul.mubr.bf16.gmra.mrb[0].mxu0 %v228
    %v275 = vpop.f32.mrb[0].mxu0
    %v276 = vadd.f32 %v240, %v275
    %v277 = vpop.f32.mrb[0].mxu0
    %v278 = vpop.f32.mrb[0].mxu0
    %v279 = vpop.f32.mrb[0].mxu0
    %280 = vdwg.mxu0
    %v281 = vtanh.pop %v276
    %vm282 = vcmask 57344
    %283 = vst.msk [vmem:[#allocation7] sm:$0x1] %vm282, %v281
    // Predicated region
    $region22: #{tpu_custom_call.1} parent=1 // pred_check
      _
    $region23: #{tpu_custom_call.1} parent=1 // pred_check_branch
      %285 = sbr.rel (0) target = $region25
    $region24: #{tpu_custom_call.1} parent=1 // pred_region
      %s287 = ssub.s32 16, 16
      %288 = vsyncadd [#allocation4], %s287
      %s290 = sshll.u32 [#allocation7], 4
      %s291 = int_to_ptr.vmem [resolvable:$true] %s290
      %293 = dma.vmem_to_hbm [thread:$0]  %s291, 16, %s3, [#allocation4]
    $region25: #{tpu_custom_call.1} parent=1 // pred_fallthru
      _
    // Predicated region
    $region26: #{tpu_custom_call.1} parent=1 // pred_check
      _
    $region27: #{tpu_custom_call.1} parent=1 // pred_check_branch
      %295 = sbr.rel (0) target = $region29
    $region28: #{tpu_custom_call.1} parent=1 // pred_region
      %296 = dma.done [#allocation4], 16
    $region29: #{tpu_custom_call.1} parent=1 // pred_fallthru
      _
    %297 = vsyncpa [#allocation3], 1
    %298 = vsyncpa [#allocation6], 1
    %299 = vsyncpa [#allocation4], 1

</llo_original>
